<compile_context>
chip_gen: v5e
topology: v5e:2x2
jax: 0.10.0
libtpu: 0.0.40
codegen_flags: <defaults>
</compile_context>

<pallas_src>
import jax
import jax.numpy as jnp
from jax import lax
from jax.experimental import pallas as pl
from jax.experimental.pallas import tpu as pltpu


def _dwpw_kernel(xs_ref, wdw_ref, wpw_ref, bpw_ref, o_ref):
    # xs_ref : (1, KH*KW, TH, Wo*C)   per-tap lane-dense input patches (band)
    # wdw_ref: (KH*KW, TH, Wo*C)      depthwise weights, tiled over Wo and TH
    # wpw_ref: (Wo*C, Wo*Cout)        pointwise 1x1 weights as kron(I_Wo, W_pw)
    # bpw_ref: (TH, Wo*Cout)          fused bias tile(b_dw @ W_pw + b_pw)
    # o_ref  : (1, TH, Wo*Cout)       folded output row band
    xs = xs_ref[0]        # (KHW, TH, WoC) -- hoisted: one load per grid step
    wdw = wdw_ref[...]    # (KHW, TH, WoC) -- hoisted: one load per grid step
    khw = xs.shape[0]

    # Depthwise stage: pure aligned vreg*vreg FMAs, init from the first tap.
    acc = xs[0] * wdw[0]
    for t in range(1, khw):
        acc = acc + xs[t] * wdw[t]

    # Pointwise 1x1 conv in the folded layout: one MXU matmul, no relayout.
    wpw = wpw_ref[...]
    lhs = acc if acc.dtype == wpw.dtype else acc.astype(wpw.dtype)
    out = jnp.dot(lhs, wpw, preferred_element_type=jnp.float32)
    out = out + bpw_ref[...]
    o_ref[0] = out.astype(o_ref.dtype)


def _pick_row_band(Ho, per_row_bytes, budget=8 << 20):
    """Largest output-row band (per perf review prefer TH=Ho, fewest steps);
    only split into multiple-of-8 bands if a full-height band would be big."""
    if Ho <= 8 or Ho * per_row_bytes <= budget:
        return Ho
    cands = [t for t in range(8, Ho, 8)
             if Ho % t == 0 and t * per_row_bytes <= budget]
    return max(cands) if cands else Ho


def depthwise_conv2d(x_nchw, w_dw, b_dw, w_pw, b_pw, *, stride=1, padding=1):
    """Matches torch: Conv2d(C,C,K,pad,groups=C,stride) -> Conv2d(C,Cout,1).

    x_nchw : (N, C, H, W)
    w_dw   : (KH, KW, C)      (torch depthwise weight (C,1,KH,KW) transposed)
    b_dw   : (C,)
    w_pw   : (C, Cout)        (torch pointwise weight (Cout,C,1,1) transposed)
    b_pw   : (Cout,)
    returns: (N, Cout, Ho, Wo)
    """
    N, C, H, W = x_nchw.shape
    KH, KW, _ = w_dw.shape
    Cout = w_pw.shape[1]
    Ho = (H + 2 * padding - KH) // stride + 1
    Wo = (W + 2 * padding - KW) // stride + 1
    KHW = KH * KW
    WoC, WoCout = Wo * C, Wo * Cout

    # ---- wrapper-side layout plumbing (no arithmetic hoisted) ----
    # NCHW -> NHWC, zero-pad.
    x_nhwc = jnp.transpose(x_nchw, (0, 2, 3, 1))
    xp = jnp.pad(x_nhwc, ((0, 0), (padding, padding),
                          (padding, padding), (0, 0)))

    # Per-tap lane-dense patches: xs[n, kh*KW+kw, ho, wo*C+c]
    #   = xp[n, ho*stride+kh, wo*stride+kw, c].
    # Every tap inside the kernel is then an aligned element-wise FMA; stride
    # decimation happens here, so the kernel has a single lane-dense path.
    taps = []
    for kh in range(KH):
        for kw in range(KW):
            sl = lax.slice(
                xp, (0, kh, kw, 0),
                (N, kh + (Ho - 1) * stride + 1, kw + (Wo - 1) * stride + 1, C),
                (1, stride, stride, 1))                       # (N, Ho, Wo, C)
            taps.append(sl.reshape(N, Ho, WoC))
    xs = jnp.stack(taps, axis=1)                              # (N, KHW, Ho, WoC)

    itemsize = jnp.dtype(x_nchw.dtype).itemsize
    per_row_bytes = 2 * (2 * KHW * WoC + WoCout) * itemsize   # double-buffered
    TH = _pick_row_band(Ho, per_row_bytes)
    nb = Ho // TH

    # Depthwise weights: tiled across Wo and pre-broadcast across the TH rows
    # so the in-kernel tap multiply needs no broadcast at all.
    wdw_f = jnp.tile(w_dw.reshape(KHW, C), (1, Wo))           # (KHW, WoC)
    wdw_f = jnp.broadcast_to(wdw_f[:, None, :], (KHW, TH, WoC))

    # Pointwise 1x1 as block-diagonal kron(I_Wo, W_pw); depthwise bias folded
    # into the pointwise bias:  (acc + b_dw) @ W_pw + b_pw
    #                         =  acc @ W_pw + (b_dw @ W_pw + b_pw).
    wpw_big = jnp.kron(jnp.eye(Wo, dtype=w_pw.dtype), w_pw)   # (WoC, WoCout)
    b_eff = jnp.tile(b_dw @ w_pw + b_pw, Wo).reshape(1, WoCout)
    bpw_f = jnp.broadcast_to(b_eff, (TH, WoCout))             # (TH, WoCout)

    # VMEM limit: sized from the real block footprint, capped at device VMEM.
    block_bytes = (KHW * TH * WoC            # xs band
                   + KHW * TH * WoC          # depthwise weights
                   + WoC * WoCout            # kron pointwise weight
                   + TH * WoCout             # bias
                   + TH * WoCout) * itemsize  # output band
    try:
        vmem_cap = int(pltpu.get_tpu_info().vmem_capacity_bytes)
    except Exception:  # pragma: no cover - conservative fallback
        vmem_cap = 64 << 20
    vmem_limit = int(min(vmem_cap, max(4 << 20, 8 * block_bytes)))

    out_f = pl.pallas_call(
        _dwpw_kernel,
        out_shape=jax.ShapeDtypeStruct((N, Ho, WoCout), x_nchw.dtype),
        grid=(N, nb),
        in_specs=[
            pl.BlockSpec((1, KHW, TH, WoC), lambda n, b: (n, 0, b, 0)),
            pl.BlockSpec((KHW, TH, WoC), lambda n, b: (0, 0, 0)),
            pl.BlockSpec((WoC, WoCout), lambda n, b: (0, 0)),
            pl.BlockSpec((TH, WoCout), lambda n, b: (0, 0)),
        ],
        out_specs=pl.BlockSpec((1, TH, WoCout), lambda n, b: (n, b, 0)),
        compiler_params=pltpu.CompilerParams(
            dimension_semantics=("parallel", "parallel"),
            vmem_limit_bytes=vmem_limit),
    )(xs, wdw_f, wpw_big, bpw_f)

    # Un-fold: (N, Ho, Wo*Cout) -> (N, Ho, Wo, Cout) -> NCHW.
    return jnp.transpose(out_f.reshape(N, Ho, Wo, Cout), (0, 3, 1, 2))


def _reference(x_nchw, w_dw, b_dw, w_pw, b_pw, *, stride=1, padding=1):
    """Pure-JAX reference using lax.conv_general_dilated (NCHW, like PyTorch)."""
    C = x_nchw.shape[1]
    Cout = w_pw.shape[1]
    # depthwise: torch weight layout (C, 1, KH, KW)
    w_dw_t = jnp.transpose(w_dw, (2, 0, 1))[:, None, :, :]
    y = lax.conv_general_dilated(
        x_nchw, w_dw_t, window_strides=(stride, stride),
        padding=[(padding, padding), (padding, padding)],
        dimension_numbers=("NCHW", "OIHW", "NCHW"),
        feature_group_count=C)
    y = y + b_dw.reshape(1, C, 1, 1)
    # pointwise: torch weight layout (Cout, C, 1, 1)
    w_pw_t = jnp.transpose(w_pw, (1, 0))[:, :, None, None]
    z = lax.conv_general_dilated(
        y, w_pw_t, window_strides=(1, 1), padding=[(0, 0), (0, 0)],
        dimension_numbers=("NCHW", "OIHW", "NCHW"))
    return z + b_pw.reshape(1, Cout, 1, 1)


if __name__ == "__main__":
    # Module hyper-params (small, consistent with DepthWiseConv2d forward).
    N, C_in, C_out = 2, 4, 8
    H = W = 16
    K, PAD, STRIDE = 3, 1, 1

    key = jax.random.PRNGKey(0)
    kx, kdw, kbdw, kpw, kbpw = jax.random.split(key, 5)

    x = jax.random.normal(kx, (N, C_in, H, W), dtype=jnp.float32)
    w_dw = jax.random.normal(kdw, (K, K, C_in), dtype=jnp.float32) * 0.1
    b_dw = jax.random.normal(kbdw, (C_in,), dtype=jnp.float32) * 0.1
    w_pw = jax.random.normal(kpw, (C_in, C_out), dtype=jnp.float32) * 0.1
    b_pw = jax.random.normal(kbpw, (C_out,), dtype=jnp.float32) * 0.1

    out = depthwise_conv2d(x, w_dw, b_dw, w_pw, b_pw, stride=STRIDE, padding=PAD)
    out = jax.block_until_ready(out)

    ref = _reference(x, w_dw, b_dw, w_pw, b_pw, stride=STRIDE, padding=PAD)
    Ho = (H + 2 * PAD - K) // STRIDE + 1
    Wo = (W + 2 * PAD - K) // STRIDE + 1
    assert out.shape == (N, C_out, Ho, Wo), out.shape
    assert jnp.allclose(out, ref, atol=1e-4, rtol=1e-4), \
        float(jnp.max(jnp.abs(out - ref)))

    print("KERNEL_OK")
</pallas_src>

<mosaic_0001>
module attributes {stable_mosaic.version = 11 : i64} {
  func.func @_dwpw_kernel(%arg0: i32, %arg1: i32, %arg2: memref<1x9x16x64xf32, #tpu.memory_space<vmem>>, %arg3: memref<9x16x64xf32, #tpu.memory_space<vmem>>, %arg4: memref<64x128xf32, #tpu.memory_space<vmem>>, %arg5: memref<16x128xf32, #tpu.memory_space<vmem>>, %arg6: memref<1x16x128xf32, #tpu.memory_space<vmem>>) attributes {dimension_semantics = [#tpu.dimension_semantics<parallel>, #tpu.dimension_semantics<parallel>], iteration_bounds = array<i64: 2, 1>, scalar_prefetch = 0 : i64, scratch_operands = 0 : i64, tpu.core_type = #tpu.core_type<tc>, window_params = [{transform_indices = @transform_0, window_bounds = array<i64: 1, 9, 16, 64>}, {pipeline_mode = #tpu.pipeline_mode<synchronous>, transform_indices = @transform_1, window_bounds = array<i64: 9, 16, 64>}, {pipeline_mode = #tpu.pipeline_mode<synchronous>, transform_indices = @transform_2, window_bounds = array<i64: 64, 128>}, {pipeline_mode = #tpu.pipeline_mode<synchronous>, transform_indices = @transform_3, window_bounds = array<i64: 16, 128>}, {transform_indices = @transform_4, window_bounds = array<i64: 1, 16, 128>}]} {
    %c0 = arith.constant 0 : index
    %c0_0 = arith.constant 0 : index
    %c0_1 = arith.constant 0 : index
    %c0_2 = arith.constant 0 : index
    %0 = vector.load %arg2[%c0, %c0_0, %c0_1, %c0_2] : memref<1x9x16x64xf32, #tpu.memory_space<vmem>>, vector<1x9x16x64xf32>
    %1 = vector.shape_cast %0 : vector<1x9x16x64xf32> to vector<9x16x64xf32>
    %c0_3 = arith.constant 0 : index
    %c0_4 = arith.constant 0 : index
    %c0_5 = arith.constant 0 : index
    %2 = vector.load %arg3[%c0_3, %c0_4, %c0_5] : memref<9x16x64xf32, #tpu.memory_space<vmem>>, vector<9x16x64xf32>
    %3 = vector.extract_strided_slice %1 {offsets = [0, 0, 0], sizes = [1, 16, 64], strides = [1, 1, 1]} : vector<9x16x64xf32> to vector<1x16x64xf32>
    %4 = vector.shape_cast %3 : vector<1x16x64xf32> to vector<16x64xf32>
    %5 = vector.extract_strided_slice %2 {offsets = [0, 0, 0], sizes = [1, 16, 64], strides = [1, 1, 1]} : vector<9x16x64xf32> to vector<1x16x64xf32>
    %6 = vector.shape_cast %5 : vector<1x16x64xf32> to vector<16x64xf32>
    %7 = arith.mulf %4, %6 : vector<16x64xf32>
    %8 = vector.extract_strided_slice %1 {offsets = [1, 0, 0], sizes = [1, 16, 64], strides = [1, 1, 1]} : vector<9x16x64xf32> to vector<1x16x64xf32>
    %9 = vector.shape_cast %8 : vector<1x16x64xf32> to vector<16x64xf32>
    %10 = vector.extract_strided_slice %2 {offsets = [1, 0, 0], sizes = [1, 16, 64], strides = [1, 1, 1]} : vector<9x16x64xf32> to vector<1x16x64xf32>
    %11 = vector.shape_cast %10 : vector<1x16x64xf32> to vector<16x64xf32>
    %12 = arith.mulf %9, %11 : vector<16x64xf32>
    %13 = arith.addf %7, %12 : vector<16x64xf32>
    %14 = vector.extract_strided_slice %1 {offsets = [2, 0, 0], sizes = [1, 16, 64], strides = [1, 1, 1]} : vector<9x16x64xf32> to vector<1x16x64xf32>
    %15 = vector.shape_cast %14 : vector<1x16x64xf32> to vector<16x64xf32>
    %16 = vector.extract_strided_slice %2 {offsets = [2, 0, 0], sizes = [1, 16, 64], strides = [1, 1, 1]} : vector<9x16x64xf32> to vector<1x16x64xf32>
    %17 = vector.shape_cast %16 : vector<1x16x64xf32> to vector<16x64xf32>
    %18 = arith.mulf %15, %17 : vector<16x64xf32>
    %19 = arith.addf %13, %18 : vector<16x64xf32>
    %20 = vector.extract_strided_slice %1 {offsets = [3, 0, 0], sizes = [1, 16, 64], strides = [1, 1, 1]} : vector<9x16x64xf32> to vector<1x16x64xf32>
    %21 = vector.shape_cast %20 : vector<1x16x64xf32> to vector<16x64xf32>
    %22 = vector.extract_strided_slice %2 {offsets = [3, 0, 0], sizes = [1, 16, 64], strides = [1, 1, 1]} : vector<9x16x64xf32> to vector<1x16x64xf32>
    %23 = vector.shape_cast %22 : vector<1x16x64xf32> to vector<16x64xf32>
    %24 = arith.mulf %21, %23 : vector<16x64xf32>
    %25 = arith.addf %19, %24 : vector<16x64xf32>
    %26 = vector.extract_strided_slice %1 {offsets = [4, 0, 0], sizes = [1, 16, 64], strides = [1, 1, 1]} : vector<9x16x64xf32> to vector<1x16x64xf32>
    %27 = vector.shape_cast %26 : vector<1x16x64xf32> to vector<16x64xf32>
    %28 = vector.extract_strided_slice %2 {offsets = [4, 0, 0], sizes = [1, 16, 64], strides = [1, 1, 1]} : vector<9x16x64xf32> to vector<1x16x64xf32>
    %29 = vector.shape_cast %28 : vector<1x16x64xf32> to vector<16x64xf32>
    %30 = arith.mulf %27, %29 : vector<16x64xf32>
    %31 = arith.addf %25, %30 : vector<16x64xf32>
    %32 = vector.extract_strided_slice %1 {offsets = [5, 0, 0], sizes = [1, 16, 64], strides = [1, 1, 1]} : vector<9x16x64xf32> to vector<1x16x64xf32>
    %33 = vector.shape_cast %32 : vector<1x16x64xf32> to vector<16x64xf32>
    %34 = vector.extract_strided_slice %2 {offsets = [5, 0, 0], sizes = [1, 16, 64], strides = [1, 1, 1]} : vector<9x16x64xf32> to vector<1x16x64xf32>
    %35 = vector.shape_cast %34 : vector<1x16x64xf32> to vector<16x64xf32>
    %36 = arith.mulf %33, %35 : vector<16x64xf32>
    %37 = arith.addf %31, %36 : vector<16x64xf32>
    %38 = vector.extract_strided_slice %1 {offsets = [6, 0, 0], sizes = [1, 16, 64], strides = [1, 1, 1]} : vector<9x16x64xf32> to vector<1x16x64xf32>
    %39 = vector.shape_cast %38 : vector<1x16x64xf32> to vector<16x64xf32>
    %40 = vector.extract_strided_slice %2 {offsets = [6, 0, 0], sizes = [1, 16, 64], strides = [1, 1, 1]} : vector<9x16x64xf32> to vector<1x16x64xf32>
    %41 = vector.shape_cast %40 : vector<1x16x64xf32> to vector<16x64xf32>
    %42 = arith.mulf %39, %41 : vector<16x64xf32>
    %43 = arith.addf %37, %42 : vector<16x64xf32>
    %44 = vector.extract_strided_slice %1 {offsets = [7, 0, 0], sizes = [1, 16, 64], strides = [1, 1, 1]} : vector<9x16x64xf32> to vector<1x16x64xf32>
    %45 = vector.shape_cast %44 : vector<1x16x64xf32> to vector<16x64xf32>
    %46 = vector.extract_strided_slice %2 {offsets = [7, 0, 0], sizes = [1, 16, 64], strides = [1, 1, 1]} : vector<9x16x64xf32> to vector<1x16x64xf32>
    %47 = vector.shape_cast %46 : vector<1x16x64xf32> to vector<16x64xf32>
    %48 = arith.mulf %45, %47 : vector<16x64xf32>
    %49 = arith.addf %43, %48 : vector<16x64xf32>
    %50 = vector.extract_strided_slice %1 {offsets = [8, 0, 0], sizes = [1, 16, 64], strides = [1, 1, 1]} : vector<9x16x64xf32> to vector<1x16x64xf32>
    %51 = vector.shape_cast %50 : vector<1x16x64xf32> to vector<16x64xf32>
    %52 = vector.extract_strided_slice %2 {offsets = [8, 0, 0], sizes = [1, 16, 64], strides = [1, 1, 1]} : vector<9x16x64xf32> to vector<1x16x64xf32>
    %53 = vector.shape_cast %52 : vector<1x16x64xf32> to vector<16x64xf32>
    %54 = arith.mulf %51, %53 : vector<16x64xf32>
    %55 = arith.addf %49, %54 : vector<16x64xf32>
    %c0_6 = arith.constant 0 : index
    %c0_7 = arith.constant 0 : index
    %56 = vector.load %arg4[%c0_6, %c0_7] : memref<64x128xf32, #tpu.memory_space<vmem>>, vector<64x128xf32>
    %cst = arith.constant dense<0.000000e+00> : vector<16x128xf32>
    %57 = tpu.matmul %55, %56, %cst {dimension_numbers = #tpu.dot_dimension_numbers<[1], [0], [0], [1], [0, 0, 1, 1], [], []>} : vector<16x64xf32>, vector<64x128xf32>, vector<16x128xf32> -> vector<16x128xf32>
    %c0_8 = arith.constant 0 : index
    %c0_9 = arith.constant 0 : index
    %58 = vector.load %arg5[%c0_8, %c0_9] : memref<16x128xf32, #tpu.memory_space<vmem>>, vector<16x128xf32>
    %59 = arith.addf %57, %58 : vector<16x128xf32>
    %c0_10 = arith.constant 0 : index
    %c0_11 = arith.constant 0 : index
    %c0_12 = arith.constant 0 : index
    %60 = vector.load %arg6[%c0_10, %c0_11, %c0_12] : memref<1x16x128xf32, #tpu.memory_space<vmem>>, vector<1x16x128xf32>
    %61 = vector.shape_cast %60 : vector<1x16x128xf32> to vector<16x128xf32>
    %62 = vector.shape_cast %59 : vector<16x128xf32> to vector<1x16x128xf32>
    tpu.vector_store %arg6[%c0_10, %c0_11, %c0_12], %62 {strides = array<i32>} : memref<1x16x128xf32, #tpu.memory_space<vmem>>, vector<1x16x128xf32>,
    return
  }
  func.func @transform_0(%arg0: i32, %arg1: i32) -> (i32, i32, i32, i32) {
    %c0_i32 = arith.constant 0 : i32
    %c0_i32_0 = arith.constant 0 : i32
    %c0_i32_1 = arith.constant 0 : i32
    return %arg0, %c0_i32, %arg1, %c0_i32_0 : i32, i32, i32, i32
  }
  func.func @transform_1(%arg0: i32, %arg1: i32) -> (i32, i32, i32) {
    %c0_i32 = arith.constant 0 : i32
    %c0_i32_0 = arith.constant 0 : i32
    %c0_i32_1 = arith.constant 0 : i32
    %c0_i32_2 = arith.constant 0 : i32
    return %c0_i32, %c0_i32_0, %c0_i32_1 : i32, i32, i32
  }
  func.func @transform_2(%arg0: i32, %arg1: i32) -> (i32, i32) {
    %c0_i32 = arith.constant 0 : i32
    %c0_i32_0 = arith.constant 0 : i32
    %c0_i32_1 = arith.constant 0 : i32
    return %c0_i32, %c0_i32_0 : i32, i32
  }
  func.func @transform_3(%arg0: i32, %arg1: i32) -> (i32, i32) {
    %c0_i32 = arith.constant 0 : i32
    %c0_i32_0 = arith.constant 0 : i32
    %c0_i32_1 = arith.constant 0 : i32
    return %c0_i32, %c0_i32_0 : i32, i32
  }
  func.func @transform_4(%arg0: i32, %arg1: i32) -> (i32, i32, i32) {
    %c0_i32 = arith.constant 0 : i32
    %c0_i32_0 = arith.constant 0 : i32
    return %arg0, %arg1, %c0_i32 : i32, i32, i32
  }
}

</mosaic_0001>

<llo_original>
// kernel: tpu_custom_call.1
$region0: #{tpu_custom_call.1}
  #allocation0 [shape = 'u32[]', space=smem, size = 0x4, offset = 0x4, fixed_abs, tag = 'smem constant byte address 0x4 - core index']
  #allocation1 [shape = 'u32[72,128]{1,0:T(1,128)}', space=vmem, size = 0x9000, scoped, tag = 'internal scratch']
  %s0 = inlined_call_operand.hbm [shape: f32[2,9,16,64], index: 0, kind: input, shape index: {}]
  %s1 = inlined_call_operand.hbm [shape: f32[9,16,64], index: 1, kind: input, shape index: {}]
  %s2 = inlined_call_operand.hbm [shape: f32[64,128], index: 2, kind: input, shape index: {}]
  %s3 = inlined_call_operand.hbm [shape: f32[16,128], index: 3, kind: input, shape index: {}]
  %s4 = inlined_call_operand.hbm [shape: f32[2,16,128], index: 4, kind: output, shape index: {}]
  %s5 = sld [smem:[#allocation0]]
  $region65: #{tpu_custom_call.1} parent=0
    _
  %s7 = ssub.s32 1, %s5
  %s8 = scalar_select 0, %s7, %s5
  $region1: #{tpu_custom_call.1} parent=0
    #allocation2 [shape = 'u8[147456]{0}', space=vmem, size = 0x24000, scoped, tag = 'input window, operand 0']
    #allocation3 [shape = 's32[2]{0}', space=sflag, size = 0x8, scoped, tag = 'scoped memory for tpu_custom_call.1']
    #allocation4 [shape = 's32[2]{0}', space=sflag, size = 0x8, scoped, tag = 'scoped memory for tpu_custom_call.1']
    #allocation5 [shape = 'u8[73728]{0}', space=vmem, size = 0x12000, scoped, tag = 'input window, operand 1, single buffered']
    #allocation6 [shape = 's32[1]{0}', space=sflag, size = 0x4, scoped, tag = 'scoped memory for tpu_custom_call.1']
    #allocation7 [shape = 'u8[32768]{0}', space=vmem, size = 0x8000, scoped, tag = 'input window, operand 2, single buffered']
    #allocation8 [shape = 'u8[8192]{0}', space=vmem, size = 0x2000, scoped, tag = 'input window, operand 3, single buffered']
    #allocation9 [shape = 's32[1]{0}', space=sflag, size = 0x4, scoped, tag = 'scoped memory for tpu_custom_call.1']
    #allocation10 [shape = 'u8[16384]{0}', space=vmem, size = 0x4000, scoped, tag = 'output window, operand 0']
    %9 = vsyncpa [#allocation3], 0
    %s10 = scalar_lea.sflag [#allocation3], 1
    %11 = vsyncpa %s10, 0
    %12 = vsyncpa [#allocation6], 0
    %13 = vsyncpa [#allocation9], 0
    %14 = vsyncpa [#allocation4], 0
    %s15 = scalar_lea.sflag [#allocation4], 1
    %16 = vsyncpa %s15, 0
    loop: start=0, step=1, limit=4
    $region2: #{tpu_custom_call.1} parent=1 // loop_pre_header
      _
    $region3: #{tpu_custom_call.1} parent=1 // loop_header
      %s18 = sphi 0, %s22
      %p19 = scmp.ge.s32.totalorder %s18, 4
      %s25 = sphi 0, %s37
      %s26 = sphi 0, %s33
      %s27 = sphi 0, %s25
      %s28 = sphi 0, %s26
      %s29 = sphi 0, %s27
      %s30 = sphi 0, %s28
      %s42 = sphi 0, %s44
      %s45 = sphi 0, %s42
      %s46 = sphi 0, %s45
      %s62 = sphi 0, %s46
      %s66 = sphi 0, %s66
      %s68 = sphi 0, %s66
      %s69 = sphi 0, %s68
      %s83 = sphi 0, %s69
      %s87 = sphi 0, %s87
      %s89 = sphi 0, %s87
      %s90 = sphi 0, %s89
      %s104 = sphi 0, %s90
      %s108 = sphi 0, %s108
      %s110 = sphi 0, %s108
      %s111 = sphi 0, %s110
      %s125 = sphi 0, %s111
      %s133 = sphi 0, %s135
      %s136 = sphi 0, %s133
      %s137 = sphi 0, %s136
      %s153 = sphi 0, %s137
    $region4: #{tpu_custom_call.1} parent=1 // loop_header_branch
      %21 = sbr.rel (%p19) target = $region8
    $region5: #{tpu_custom_call.1} parent=1 // loop_body
      %s23 = ssub.s32 %s18, 1
      %s24 = ssub.s32 %s18, 2
      %s31 = sadd.s32 1, %s26
      %p32 = scmp.ge.s32.totalorder %s31, 1
      %s33 = scalar_select %p32, 0, %s31
      %s34 = sadd.s32 1, %s25
      %s35 = scalar_select %p32, %s34, %s25
      %p36 = scmp.ge.s32.totalorder %s35, 2
      %s37 = scalar_select %p36, 0, %s35
      %s38 = ssub.s32 %s25, %s37
      %s39 = ssub.s32 %s26, %s33
      %s40 = sor.u32 %s38, %s39
      %p41 = scmp.eq.s32.totalorder %s40, 0
      %s43 = sadd.s32 %s42, 1
      %s44 = scalar_select %p41, %s42, %s43
      %p47 = pneg %p41
      %p48 = scmp.eq.s32.totalorder %s18, 1
      %p49 = por %p47, %p48
      %p50 = scmp.ne.s32.totalorder %s42, %s45
      %p51 = scmp.eq.s32.totalorder %s18, 0
      %p52 = por %p50, %p51
      %p53 = scmp.ne.s32.totalorder %s42, %s45
      %p54 = scmp.eq.s32.totalorder %s23, 1
      %p55 = por %p53, %p54
      %p56 = scmp.ne.s32.totalorder %s45, %s46
      %p57 = scmp.eq.s32.totalorder %s23, 0
      %p58 = por %p56, %p57
      %p59 = scmp.ne.s32.totalorder %s45, %s46
      %p60 = scmp.eq.s32.totalorder %s24, 1
      %p61 = por %p59, %p60
      %p63 = scmp.ne.s32.totalorder %s46, %s62
      %p64 = scmp.eq.s32.totalorder %s24, 0
      %p65 = por %p63, %p64
      %s67 = sadd.s32 %s66, 1
      %p70 = scmp.eq.s32.totalorder %s18, 1
      %p71 = scmp.ne.s32.totalorder %s66, %s68
      %p72 = scmp.eq.s32.totalorder %s18, 0
      %p73 = por %p71, %p72
      %p74 = scmp.ne.s32.totalorder %s66, %s68
      %p75 = scmp.eq.s32.totalorder %s23, 1
      %p76 = por %p74, %p75
      %p77 = scmp.ne.s32.totalorder %s68, %s69
      %p78 = scmp.eq.s32.totalorder %s23, 0
      %p79 = por %p77, %p78
      %p80 = scmp.ne.s32.totalorder %s68, %s69
      %p81 = scmp.eq.s32.totalorder %s24, 1
      %p82 = por %p80, %p81
      %p84 = scmp.ne.s32.totalorder %s69, %s83
      %p85 = scmp.eq.s32.totalorder %s24, 0
      %p86 = por %p84, %p85
      %s88 = sadd.s32 %s87, 1
      %p91 = scmp.eq.s32.totalorder %s18, 1
      %p92 = scmp.ne.s32.totalorder %s87, %s89
      %p93 = scmp.eq.s32.totalorder %s18, 0
      %p94 = por %p92, %p93
      %p95 = scmp.ne.s32.totalorder %s87, %s89
      %p96 = scmp.eq.s32.totalorder %s23, 1
      %p97 = por %p95, %p96
      %p98 = scmp.ne.s32.totalorder %s89, %s90
      %p99 = scmp.eq.s32.totalorder %s23, 0
      %p100 = por %p98, %p99
      %p101 = scmp.ne.s32.totalorder %s89, %s90
      %p102 = scmp.eq.s32.totalorder %s24, 1
      %p103 = por %p101, %p102
      %p105 = scmp.ne.s32.totalorder %s90, %s104
      %p106 = scmp.eq.s32.totalorder %s24, 0
      %p107 = por %p105, %p106
      %s109 = sadd.s32 %s108, 1
      %p112 = scmp.eq.s32.totalorder %s18, 1
      %p113 = scmp.ne.s32.totalorder %s108, %s110
      %p114 = scmp.eq.s32.totalorder %s18, 0
      %p115 = por %p113, %p114
      %p116 = scmp.ne.s32.totalorder %s108, %s110
      %p117 = scmp.eq.s32.totalorder %s23, 1
      %p118 = por %p116, %p117
      %p119 = scmp.ne.s32.totalorder %s110, %s111
      %p120 = scmp.eq.s32.totalorder %s23, 0
      %p121 = por %p119, %p120
      %p122 = scmp.ne.s32.totalorder %s110, %s111
      %p123 = scmp.eq.s32.totalorder %s24, 1
      %p124 = por %p122, %p123
      %p126 = scmp.ne.s32.totalorder %s111, %s125
      %p127 = scmp.eq.s32.totalorder %s24, 0
      %p128 = por %p126, %p127
      %s129 = ssub.s32 %s25, %s37
      %s130 = ssub.s32 %s26, %s33
      %s131 = sor.u32 %s129, %s130
      %p132 = scmp.eq.s32.totalorder %s131, 0
      %s134 = sadd.s32 %s133, 1
      %s135 = scalar_select %p132, %s133, %s134
      %p138 = pneg %p132
      %p139 = scmp.eq.s32.totalorder %s18, 1
      %p140 = por %p138, %p139
      %p141 = scmp.ne.s32.totalorder %s133, %s136
      %p142 = scmp.eq.s32.totalorder %s18, 0
      %p143 = por %p141, %p142
      %p144 = scmp.ne.s32.totalorder %s133, %s136
      %p145 = scmp.eq.s32.totalorder %s23, 1
      %p146 = por %p144, %p145
      %p147 = scmp.ne.s32.totalorder %s136, %s137
      %p148 = scmp.eq.s32.totalorder %s23, 0
      %p149 = por %p147, %p148
      %p150 = scmp.ne.s32.totalorder %s136, %s137
      %p151 = scmp.eq.s32.totalorder %s24, 1
      %p152 = por %p150, %p151
      %p154 = scmp.ne.s32.totalorder %s137, %s153
      %p155 = scmp.eq.s32.totalorder %s24, 0
      %p156 = por %p154, %p155
      %p157 = scmp.le.s32.totalorder 1, %s18
      %p158 = scmp.lt.s32.totalorder %s18, 3
      %p159 = pnand %p157, %p158
      %p160 = pneg %p159
      // Predicated region
      $region9: #{tpu_custom_call.1} parent=5 // pred_check
        _
      $region10: #{tpu_custom_call.1} parent=5 // pred_check_branch
        %162 = sbr.rel (%p159) target = $region12
      $region11: #{tpu_custom_call.1} parent=5 // pred_region
        %s163 = ssub.s32 %s18, 1
        // Predicated region
        $region13: #{tpu_custom_call.1} parent=11 // pred_check
          %p164 = pneg %p79
        $region14: #{tpu_custom_call.1} parent=11 // pred_check_branch
          %166 = sbr.rel (%p164) target = $region16
        $region15: #{tpu_custom_call.1} parent=11 // pred_region
          %168 = vsyncadd [#allocation6], 0
          %s169 = sshll.u32 %s1, 4
          %s170 = int_to_ptr.hbm [resolvable:$true] %s169
          %s171 = sshll.u32 [#allocation5], 4
          %s172 = int_to_ptr.vmem [resolvable:$true] %s171
          %177 = dma.hbm_to_vmem [thread:$0]  %s170, 2304, %s172, [#allocation6], 128, 128, 8
        $region16: #{tpu_custom_call.1} parent=11 // pred_fallthru
          _
        // Predicated region
        $region17: #{tpu_custom_call.1} parent=11 // pred_check
          %p178 = pneg %p100
        $region18: #{tpu_custom_call.1} parent=11 // pred_check_branch
          %180 = sbr.rel (%p178) target = $region20
        $region19: #{tpu_custom_call.1} parent=11 // pred_region
          %182 = vsyncadd [#allocation6], 0
          %s183 = sshll.u32 %s2, 4
          %s184 = int_to_ptr.hbm [resolvable:$true] %s183
          %s185 = sshll.u32 [#allocation7], 4
          %s186 = int_to_ptr.vmem [resolvable:$true] %s185
          %191 = dma.hbm_to_vmem [thread:$0]  %s184, 1024, %s186, [#allocation6], 128, 128, 8
        $region20: #{tpu_custom_call.1} parent=11 // pred_fallthru
          _
        // Predicated region
        $region21: #{tpu_custom_call.1} parent=11 // pred_check
          %p192 = pneg %p121
        $region22: #{tpu_custom_call.1} parent=11 // pred_check_branch
          %194 = sbr.rel (%p192) target = $region24
        $region23: #{tpu_custom_call.1} parent=11 // pred_region
          %196 = vsyncadd [#allocation9], 0
          %s197 = sshll.u32 %s3, 4
          %s198 = int_to_ptr.hbm [resolvable:$true] %s197
          %s199 = sshll.u32 [#allocation8], 4
          %s200 = int_to_ptr.vmem [resolvable:$true] %s199
          %205 = dma.hbm_to_vmem [thread:$0]  %s198, 256, %s200, [#allocation9], 128, 128, 8
        $region24: #{tpu_custom_call.1} parent=11 // pred_fallthru
          _
      $region12: #{tpu_custom_call.1} parent=5 // pred_fallthru
        _
      %p206 = scmp.lt.s32.totalorder %s18, 2
      // Predicated region
      $region25: #{tpu_custom_call.1} parent=5 // pred_check
        %p207 = pneg %p206
      $region26: #{tpu_custom_call.1} parent=5 // pred_check_branch
        %209 = sbr.rel (%p207) target = $region28
      $region27: #{tpu_custom_call.1} parent=5 // pred_region
        // Predicated region
        $region29: #{tpu_custom_call.1} parent=27 // pred_check
          %p210 = pneg %p52
        $region30: #{tpu_custom_call.1} parent=27 // pred_check_branch
          %212 = sbr.rel (%p210) target = $region32
        $region31: #{tpu_custom_call.1} parent=27 // pred_region
          %s213 = sand.u32 %s42, 1
          %s214 = scalar_lea.sflag [#allocation3], %s213
          %s215 = sand.u32 %s42, 1
          %s216 = smul.addr %s215, 144
          %s217 = scalar_lea.vmem [#allocation2], %s216
          %s218 = smul.u32 2, %s26
          %220 = vsyncadd %s214, 0
          %s221 = smul.addr %s25, 18
          %s222 = sadd.s32 %s218, %s221
          %s223 = smul.addr %s222, 8
          %s224 = scalar_lea.hbm %s0, %s223
          %s225 = sshll.u32 %s224, 4
          %s226 = int_to_ptr.hbm [resolvable:$true] %s225
          %s227 = sshll.u32 %s217, 4
          %s228 = int_to_ptr.vmem [resolvable:$true] %s227
          %233 = dma.hbm_to_vmem [thread:$0]  %s226, 2304, %s228, %s214, 128, 128, 8
        $region32: #{tpu_custom_call.1} parent=27 // pred_fallthru
          _
      $region28: #{tpu_custom_call.1} parent=5 // pred_fallthru
        _
      %p234 = scmp.le.s32.totalorder 1, %s18
      %p235 = scmp.lt.s32.totalorder %s18, 3
      %p236 = pnand %p234, %p235
      %p237 = pneg %p236
      // Predicated region
      $region33: #{tpu_custom_call.1} parent=5 // pred_check
        _
      $region34: #{tpu_custom_call.1} parent=5 // pred_check_branch
        %239 = sbr.rel (%p236) target = $region36
      $region35: #{tpu_custom_call.1} parent=5 // pred_region
        %s240 = ssub.s32 %s18, 1
        %s241 = sand.u32 %s45, 1
        %s242 = scalar_lea.sflag [#allocation3], %s241
        %s243 = sand.u32 %s45, 1
        %s244 = smul.addr %s243, 144
        %s245 = scalar_lea.vmem [#allocation2], %s244
        // Predicated region
        $region37: #{tpu_custom_call.1} parent=35 // pred_check
          %p246 = pneg %p58
        $region38: #{tpu_custom_call.1} parent=35 // pred_check_branch
          %248 = sbr.rel (%p246) target = $region40
        $region39: #{tpu_custom_call.1} parent=35 // pred_region
          %250 = dma.done %s242, 2304
        $region40: #{tpu_custom_call.1} parent=35 // pred_fallthru
          _
        // Predicated region
        $region41: #{tpu_custom_call.1} parent=35 // pred_check
          %p251 = pneg %p79
        $region42: #{tpu_custom_call.1} parent=35 // pred_check_branch
          %253 = sbr.rel (%p251) target = $region44
        $region43: #{tpu_custom_call.1} parent=35 // pred_region
          %255 = dma.done [#allocation6], 2304
        $region44: #{tpu_custom_call.1} parent=35 // pred_fallthru
          _
        // Predicated region
        $region45: #{tpu_custom_call.1} parent=35 // pred_check
          %p256 = pneg %p100
        $region46: #{tpu_custom_call.1} parent=35 // pred_check_branch
          %258 = sbr.rel (%p256) target = $region48
        $region47: #{tpu_custom_call.1} parent=35 // pred_region
          %260 = dma.done [#allocation6], 1024
        $region48: #{tpu_custom_call.1} parent=35 // pred_fallthru
          _
        // Predicated region
        $region49: #{tpu_custom_call.1} parent=35 // pred_check
          %p261 = pneg %p121
        $region50: #{tpu_custom_call.1} parent=35 // pred_check_branch
          %263 = sbr.rel (%p261) target = $region52
        $region51: #{tpu_custom_call.1} parent=35 // pred_region
          %265 = dma.done [#allocation9], 256
        $region52: #{tpu_custom_call.1} parent=35 // pred_fallthru
          _
        %s266 = sand.u32 %s45, 1
        %s267 = scalar_lea.sflag [#allocation3], %s266
        %s268 = sand.u32 %s45, 1
        %s269 = smul.addr %s268, 144
        %s270 = scalar_lea.vmem [#allocation2], %s269
        %p271 = pneg %p58
        %p272 = pneg %p55
        %p273 = pneg %p79
        %p274 = pneg %p76
        %p275 = pneg %p100
        %p276 = pneg %p97
        %p277 = pneg %p121
        %p278 = pneg %p118
        %p279 = pneg %p149
        %p280 = pneg %p146
        %s281 = sand.u32 %s136, 1
        %s282 = scalar_lea.sflag [#allocation4], %s281
        %s283 = sand.u32 %s136, 1
        %s284 = smul.addr %s283, 16
        %s285 = scalar_lea.vmem [#allocation10], %s284
        %s286 = smul.u32 2, %s28
        %s287 = smul.u32 2, %s28
        %v288 = vld [vmem:[%s245] sm:$0xff]
        %v289 = vld [vmem:[%s245 + $0x8] sm:$0xff]
        %v290 = vld [vmem:[%s245 + $0x10] sm:$0xff]
        %v291 = vld [vmem:[%s245 + $0x18] sm:$0xff]
        %v292 = vld [vmem:[%s245 + $0x20] sm:$0xff]
        %v293 = vld [vmem:[%s245 + $0x28] sm:$0xff]
        %v294 = vld [vmem:[%s245 + $0x30] sm:$0xff]
        %v295 = vld [vmem:[%s245 + $0x38] sm:$0xff]
        %v296 = vld [vmem:[%s245 + $0x40] sm:$0xff]
        %v297 = vld [vmem:[%s245 + $0x48] sm:$0xff]
        %v298 = vld [vmem:[%s245 + $0x50] sm:$0xff]
        %v299 = vld [vmem:[%s245 + $0x58] sm:$0xff]
        %v300 = vld [vmem:[%s245 + $0x60] sm:$0xff]
        %v301 = vld [vmem:[%s245 + $0x68] sm:$0xff]
        %v302 = vld [vmem:[%s245 + $0x70] sm:$0xff]
        %v303 = vld [vmem:[%s245 + $0x78] sm:$0xff]
        %v304 = vld [vmem:[%s245 + $0x80] sm:$0xff]
        %v305 = vld [vmem:[%s245 + $0x88] sm:$0xff]
        %v306 = vld [vmem:[#allocation5] sm:$0xff]
        %v307 = vld [vmem:[#allocation5 + $0x8] sm:$0xff]
        %v308 = vld [vmem:[#allocation5 + $0x10] sm:$0xff]
        %v309 = vld [vmem:[#allocation5 + $0x18] sm:$0xff]
        %v310 = vld [vmem:[#allocation5 + $0x20] sm:$0xff]
        %v311 = vld [vmem:[#allocation5 + $0x28] sm:$0xff]
        %v312 = vld [vmem:[#allocation5 + $0x30] sm:$0xff]
        %v313 = vld [vmem:[#allocation5 + $0x38] sm:$0xff]
        %v314 = vld [vmem:[#allocation5 + $0x40] sm:$0xff]
        %v315 = vld [vmem:[#allocation5 + $0x48] sm:$0xff]
        %v316 = vld [vmem:[#allocation5 + $0x50] sm:$0xff]
        %v317 = vld [vmem:[#allocation5 + $0x58] sm:$0xff]
        %v318 = vld [vmem:[#allocation5 + $0x60] sm:$0xff]
        %v319 = vld [vmem:[#allocation5 + $0x68] sm:$0xff]
        %v320 = vld [vmem:[#allocation5 + $0x70] sm:$0xff]
        %v321 = vld [vmem:[#allocation5 + $0x78] sm:$0xff]
        %v322 = vld [vmem:[#allocation5 + $0x80] sm:$0xff]
        %v323 = vld [vmem:[#allocation5 + $0x88] sm:$0xff]
        %v324 = vmul.f32 %v288, %v306
        %v325 = vmul.f32 %v289, %v307
        %v326 = vmul.f32 %v290, %v308
        %v327 = vmul.f32 %v291, %v309
        %v328 = vadd.f32 %v324, %v326
        %v329 = vadd.f32 %v325, %v327
        %v330 = vmul.f32 %v292, %v310
        %v331 = vmul.f32 %v293, %v311
        %v332 = vadd.f32 %v328, %v330
        %v333 = vadd.f32 %v329, %v331
        %v334 = vmul.f32 %v294, %v312
        %v335 = vmul.f32 %v295, %v313
        %v336 = vadd.f32 %v332, %v334
        %v337 = vadd.f32 %v333, %v335
        %v338 = vmul.f32 %v296, %v314
        %v339 = vmul.f32 %v297, %v315
        %v340 = vadd.f32 %v336, %v338
        %v341 = vadd.f32 %v337, %v339
        %v342 = vmul.f32 %v298, %v316
        %v343 = vmul.f32 %v299, %v317
        %v344 = vadd.f32 %v340, %v342
        %v345 = vadd.f32 %v341, %v343
        %v346 = vmul.f32 %v300, %v318
        %v347 = vmul.f32 %v301, %v319
        %v348 = vadd.f32 %v344, %v346
        %v349 = vadd.f32 %v345, %v347
        %v350 = vmul.f32 %v302, %v320
        %v351 = vmul.f32 %v303, %v321
        %v352 = vadd.f32 %v348, %v350
        %v353 = vadd.f32 %v349, %v351
        %v354 = vmul.f32 %v304, %v322
        %v355 = vmul.f32 %v305, %v323
        %v356 = vadd.f32 %v352, %v354
        %v357 = vadd.f32 %v353, %v355
        %v358 = vld [vmem:[#allocation7] sm:$0xff]
        %v359 = vld [vmem:[#allocation7 + $0x8] sm:$0xff]
        %v360 = vld [vmem:[#allocation7 + $0x10] sm:$0xff]
        %v361 = vld [vmem:[#allocation7 + $0x18] sm:$0xff]
        %v362 = vld [vmem:[#allocation7 + $0x20] sm:$0xff]
        %v363 = vld [vmem:[#allocation7 + $0x28] sm:$0xff]
        %v364 = vld [vmem:[#allocation7 + $0x30] sm:$0xff]
        %v365 = vld [vmem:[#allocation7 + $0x38] sm:$0xff]
        %v366 = vld [vmem:[#allocation8] sm:$0xff]
        %v367 = vld [vmem:[#allocation8 + $0x8] sm:$0xff]
        %vm368 = vcmask 523264
        %v370 = vsel %vm368, %v356, 0
        %v373 = vsel %vm368, %v357, 0
        %375 = vmatpush.msra.mxu0 0.0
        %376 = vmatpush.msra.mxu0 0.0
        %377 = vmatpush.msra.mxu0 0.0
        %378 = vmatpush.msra.mxu0 0.0
        %379 = vmatpush.msra.mxu0 0.0
        %380 = vmatpush.msra.mxu0 0.0
        %381 = vmatpush.msra.mxu0 0.0
        %382 = vmatpush.msra.mxu0 0.0
        %383 = vmatpush.msra.mxu0 %v365
        %384 = vmatpush.msra.mxu0 %v364
        %385 = vmatpush.msra.mxu0 %v363
        %386 = vmatpush.msra.mxu0 %v362
        %387 = vmatpush.msra.mxu0 %v361
        %388 = vmatpush.msra.mxu0 %v360
        %389 = vmatpush.msra.mxu0 %v359
        %390 = vmatpush.msra.mxu0 %v358
        %391 = vmatmul.f32.gmra.mxu0 %v370
        %v392 = vpop.f32.mrf.mxu0
        %v393 = vadd.f32 %v366, %v392
        %394 = vmatmul.f32.gmra.mxu0 %v373
        %v395 = vpop.f32.mrf.mxu0
        %v396 = vadd.f32 %v367, %v395
        %397 = vdwg.mxu0
        %398 = vst [vmem:[%s285] sm:$0xff] %v393
        %399 = vst [vmem:[%s285 + $0x8] sm:$0xff] %v396
        %s400 = sand.u32 %s136, 1
        %s401 = scalar_lea.sflag [#allocation4], %s400
        %s402 = sand.u32 %s136, 1
        %s403 = smul.addr %s402, 16
        %s404 = scalar_lea.vmem [#allocation10], %s403
        // Predicated region
        $region53: #{tpu_custom_call.1} parent=35 // pred_check
          %p405 = pneg %p146
        $region54: #{tpu_custom_call.1} parent=35 // pred_check_branch
          %407 = sbr.rel (%p405) target = $region56
        $region55: #{tpu_custom_call.1} parent=35 // pred_region
          %s408 = smul.u32 2, %s28
          %410 = vsyncadd %s401, 0
          %s411 = smul.addr %s27, 2
          %s412 = sadd.s32 %s408, %s411
          %s413 = smul.addr %s412, 8
          %s414 = scalar_lea.hbm %s4, %s413
          %s415 = sshll.u32 %s404, 4
          %s416 = int_to_ptr.vmem [resolvable:$true] %s415
          %s417 = sshll.u32 %s414, 4
          %s418 = int_to_ptr.hbm [resolvable:$true] %s417
          %423 = dma.vmem_to_hbm [thread:$0]  %s416, 256, %s418, %s401, 128, 128, 8
        $region56: #{tpu_custom_call.1} parent=35 // pred_fallthru
          _
      $region36: #{tpu_custom_call.1} parent=5 // pred_fallthru
        _
      %p424 = scmp.le.s32.totalorder 2, %s18
      // Predicated region
      $region57: #{tpu_custom_call.1} parent=5 // pred_check
        %p425 = pneg %p424
      $region58: #{tpu_custom_call.1} parent=5 // pred_check_branch
        %427 = sbr.rel (%p425) target = $region60
      $region59: #{tpu_custom_call.1} parent=5 // pred_region
        %s428 = ssub.s32 %s18, 2
        // Predicated region
        $region61: #{tpu_custom_call.1} parent=59 // pred_check
          %p429 = pneg %p152
        $region62: #{tpu_custom_call.1} parent=59 // pred_check_branch
          %431 = sbr.rel (%p429) target = $region64
        $region63: #{tpu_custom_call.1} parent=59 // pred_region
          %s432 = sand.u32 %s137, 1
          %s433 = scalar_lea.sflag [#allocation4], %s432
          %s434 = sand.u32 %s137, 1
          %s435 = smul.addr %s434, 16
          %s436 = scalar_lea.vmem [#allocation10], %s435
          %438 = dma.done %s433, 256
        $region64: #{tpu_custom_call.1} parent=59 // pred_fallthru
          _
      $region60: #{tpu_custom_call.1} parent=5 // pred_fallthru
        _
    $region6: #{tpu_custom_call.1} parent=1 // loop_footer
      %s22 = sadd.s32 1, %s18
    $region7: #{tpu_custom_call.1} parent=1 // loop_footer_branch
      %17 = sbr.rel target = $region3
    $region8: #{tpu_custom_call.1} parent=1 // loop_exit
      _
    %439 = vsyncpa [#allocation3], 1
    %s440 = scalar_lea.sflag [#allocation3], 1
    %441 = vsyncpa %s440, 1
    %442 = vsyncpa [#allocation6], 1
    %443 = vsyncpa [#allocation9], 1
    %444 = vsyncpa [#allocation4], 1
    %s445 = scalar_lea.sflag [#allocation4], 1
    %446 = vsyncpa %s445, 1

</llo_original>
